<compile_context>
chip_gen: v7x
topology: tpu7x:2x2x1
jax: 0.10.0
libtpu: 0.0.40
codegen_flags: <defaults>
</compile_context>

<pallas_src>
import jax
import jax.numpy as jnp
from jax.experimental import pallas as pl
from jax.experimental.pallas import tpu as pltpu

EPS = 1e-5
LANES = 128

# --- packed weight buffer layout (rows, all sections 16-row aligned, lanes padded to 128)
_W1_R0, _W1_ROWS = 0, 22        # real (22,100) weights in rows 0..21, lanes 0..99
_W2_R0, _W2_R1 = 32, 160        # (128,128) block; real (100,50) in rows 32..131, lanes 0..49
_W3_R0, _W3_R1 = 160, 288       # (128,128) block; real (50,50)  in rows 160..209, lanes 0..49
_W_ROWS = 288

# --- packed f32 "vector" buffer layout: (8,128), one row per small vector
_B1_ROW = 0                     # bias1 (lanes 0..99)
_B2_ROW = 1                     # bias2 (lanes 0..49)
_B3_ROW = 2                     # bias3 (lanes 0..49)
_WD_ROW = 3                     # w4[:,1]-w4[:,0]   (lanes 0..49)
_BD_ROW = 4                     # lane0=-(b4[1]-b4[0]), lane1=+(b4[1]-b4[0])
_SG_ROW = 5                     # lane0=-1.0, lane1=+1.0
_V_ROWS = 8


def _bn_relu(h, inv_b):
    """BatchNorm1d(affine=False, training mode) + ReLU, single-pass batch stats."""
    s1 = jnp.sum(h, axis=0, keepdims=True)            # VALU/XLU reductions (free filler
    s2 = jnp.sum(h * h, axis=0, keepdims=True)        # under MXU-bound bundles)
    mean = s1 * inv_b
    var = jnp.maximum(s2 * inv_b - mean * mean, 0.0)  # biased var, clamp f32 cancellation
    h = (h - mean) * jax.lax.rsqrt(var + EPS)
    return jnp.maximum(h, 0.0)


def mushroom_kernel(x_ref, w_ref, v_ref, o_ref):
    batch = x_ref.shape[0]
    inv_b = jnp.float32(1.0 / batch)
    wdt = w_ref.dtype                                  # matmul operand dtype (f32 or bf16)

    v = v_ref[...]                                     # (8,128) f32 bias/aux rows, one load
    b1 = v[_B1_ROW:_B1_ROW + 1, :]
    b2 = v[_B2_ROW:_B2_ROW + 1, :]
    b3 = v[_B3_ROW:_B3_ROW + 1, :]
    wdiff = v[_WD_ROW:_WD_ROW + 1, :]                  # (1,128), lanes 50..127 zero
    z_bias = v[_BD_ROW:_BD_ROW + 1, 0:2]               # (1,2): [-bdiff, +bdiff]
    z_sign = v[_SG_ROW:_SG_ROW + 1, 0:2]               # (1,2): [-1, +1]

    # Layer 1: Linear(22->100) + BN + ReLU. K=22 contracts directly (Mosaic pads K).
    x = x_ref[...]                                     # (B,22) f32
    h = jnp.dot(x.astype(wdt), w_ref[_W1_R0:_W1_R0 + _W1_ROWS, :],
                preferred_element_type=jnp.float32) + b1
    h = _bn_relu(h, inv_b)                             # lanes 100..127 stay exactly 0

    # Layer 2: Linear(100->50) + BN + ReLU.
    h = jnp.dot(h.astype(wdt), w_ref[_W2_R0:_W2_R1, :],
                preferred_element_type=jnp.float32) + b2
    h = _bn_relu(h, inv_b)                             # lanes 50..127 stay exactly 0

    # Layer 3: Linear(50->50) + BN + ReLU.
    h = jnp.dot(h.astype(wdt), w_ref[_W3_R0:_W3_R1, :],
                preferred_element_type=jnp.float32) + b3
    h = _bn_relu(h, inv_b)                             # lanes 50..127 stay exactly 0

    # Output layer on VPU/XLU (no MXU): d = logit1 - logit0, then
    # softmax over 2 classes == [sigmoid(-d-bd), sigmoid(+d+bd)]  (exact identity).
    d = jnp.sum(h * wdiff, axis=-1, keepdims=True)     # (B,1)
    z2 = d * z_sign + z_bias                           # (B,2): [-(d+bd), +(d+bd)]
    o_ref[...] = 1.0 / (1.0 + jnp.exp(-z2))


def pack_params(params, weight_dtype=jnp.float32):
    """Pack parameters ONCE (outside the per-call forward).

    Returns:
      W: (288,128) matmul-weight buffer in `weight_dtype` (f32 default, bf16 optional).
      V: (8,128) f32 buffer holding biases, the folded last-layer weight difference,
         the folded bias difference and the +-1 sign row.
    """
    (w1, b1), (w2, b2), (w3, b3), (w4, b4) = [
        (jnp.asarray(w, jnp.float32), jnp.asarray(b, jnp.float32)) for (w, b) in params
    ]
    W = jnp.zeros((_W_ROWS, LANES), jnp.float32)
    W = W.at[_W1_R0:_W1_R0 + 22, 0:100].set(w1)
    W = W.at[_W2_R0:_W2_R0 + 100, 0:50].set(w2)
    W = W.at[_W3_R0:_W3_R0 + 50, 0:50].set(w3)

    V = jnp.zeros((_V_ROWS, LANES), jnp.float32)
    V = V.at[_B1_ROW, 0:100].set(b1)
    V = V.at[_B2_ROW, 0:50].set(b2)
    V = V.at[_B3_ROW, 0:50].set(b3)
    w_diff = w4[:, 1] - w4[:, 0]
    b_diff = b4[1] - b4[0]
    V = V.at[_WD_ROW, 0:50].set(w_diff)
    V = V.at[_BD_ROW, 0].set(-b_diff)
    V = V.at[_BD_ROW, 1].set(b_diff)
    V = V.at[_SG_ROW, 0].set(-1.0)
    V = V.at[_SG_ROW, 1].set(1.0)
    return W.astype(weight_dtype), V


def _vmem_cap_bytes():
    """Physical VMEM per core (generation-aware), conservative fallback = v7x (64 MiB)."""
    try:
        info = pltpu.get_tpu_info()
        cap = getattr(info, "vmem_capacity_bytes", None) or getattr(info, "vmem_bytes", None)
        if cap:
            return int(cap)
    except Exception:
        pass
    return 64 << 20


def base_net_mushroom_forward(x, packed_w, packed_v):
    """x: (B,22) float32; packed_w/packed_v: buffers from pack_params (pack once)."""
    x = jnp.asarray(x, jnp.float32)
    b, f = x.shape
    if f != 22:
        raise ValueError("BaseNetMushroom expects 22 input features")

    # Single-block design: whole batch resident (required for full-batch BN stats).
    # Generation-aware budget: ~96 MiB on v5e/v6e (128 MiB VMEM), ~48 MiB on v7x (64 MiB).
    cap = _vmem_cap_bytes()
    limit = min(int(cap * 3 // 4), 100 << 20)
    row_bytes = LANES * 4                                  # one (1,128) f32 vreg row
    w_bytes = packed_w.size * jnp.dtype(packed_w.dtype).itemsize
    v_bytes = packed_v.size * jnp.dtype(packed_v.dtype).itemsize
    est = 10 * b * row_bytes + w_bytes + v_bytes + (2 << 20)   # x/out + ~8 live (B,128) temps
    if est > limit:
        # TODO(synk): grid-tiled two-phase BN (partial sum/sumsq accumulators) + v7x
        # 2-core split instead of rejecting large batches.
        raise ValueError(
            f"batch {b} exceeds single-block full-batch-BN VMEM budget "
            f"({est} > {limit} bytes on this TPU generation)")
    vmem_limit = min(limit, max(est, 32 << 20))

    vmem_spec = pl.BlockSpec(memory_space=pltpu.MemorySpace.VMEM)
    return pl.pallas_call(
        mushroom_kernel,
        out_shape=jax.ShapeDtypeStruct((b, 2), jnp.float32),
        in_specs=[vmem_spec, vmem_spec, vmem_spec],
        out_specs=vmem_spec,
        compiler_params=pltpu.CompilerParams(vmem_limit_bytes=vmem_limit),
    )(x, packed_w, packed_v)


def init_params(key):
    """Deterministic PyTorch-default-style init: U(-1/sqrt(fan_in), 1/sqrt(fan_in))."""
    sizes = [(22, 100), (100, 50), (50, 50), (50, 2)]
    params = []
    for (fan_in, fan_out) in sizes:
        key, kw, kb = jax.random.split(key, 3)
        bound = 1.0 / jnp.sqrt(float(fan_in))
        w = jax.random.uniform(kw, (fan_in, fan_out), jnp.float32, -bound, bound)
        b = jax.random.uniform(kb, (fan_out,), jnp.float32, -bound, bound)
        params.append((w, b))
    return params


def reference_forward(x, params):
    """Independent pure-JAX reference (two-pass BN stats, true softmax)."""
    h = x
    for (w, b) in params[:-1]:
        h = h @ w + b
        mean = jnp.mean(h, axis=0, keepdims=True)
        var = jnp.mean((h - mean) ** 2, axis=0, keepdims=True)
        h = (h - mean) / jnp.sqrt(var + EPS)
        h = jnp.maximum(h, 0.0)
    w, b = params[-1]
    logits = h @ w + b
    return jax.nn.softmax(logits, axis=-1)


if __name__ == "__main__":
    key = jax.random.PRNGKey(0)
    key, kx = jax.random.split(key)

    B = 8  # small batch; mushroom dataset has 22 input features
    x = jax.random.normal(kx, (B, 22), jnp.float32)
    params = init_params(key)

    # Pack ONCE (hoisted out of the per-call forward, per perf review).
    W32, V32 = pack_params(params, jnp.float32)

    fwd = jax.jit(base_net_mushroom_forward)
    out = jax.block_until_ready(fwd(x, W32, V32))
    ref = reference_forward(x, params)

    assert out.shape == (B, 2)
    # f32 path: single-pass variance + softmax->sigmoid fold differ from the two-pass
    # reference only by f32 rounding.
    assert jnp.allclose(out, ref, atol=1e-4, rtol=1e-4), "f32 kernel mismatch vs reference"
    assert jnp.allclose(jnp.sum(out, axis=-1), jnp.ones((B,)), atol=1e-5)

    # Opt-in bf16-matmul path (MXU-native on v5e/v6e/v7x; f32 accumulate, f32 BN/softmax).
    # It intentionally deviates from the f32 reference at bf16 rounding level, so only a
    # loose sanity check is applied here.
    Wbf, Vbf = pack_params(params, jnp.bfloat16)
    out_bf = jax.block_until_ready(fwd(x, Wbf, Vbf))
    assert out_bf.shape == (B, 2)
    assert jnp.allclose(jnp.sum(out_bf, axis=-1), jnp.ones((B,)), atol=1e-4)
    assert float(jnp.max(jnp.abs(out_bf - ref))) < 0.1, "bf16 kernel deviates too far"

    print("KERNEL_OK")
</pallas_src>

<mosaic_0001>
module attributes {stable_mosaic.version = 11 : i64} {
  func.func @mushroom_kernel(%arg0: memref<8x22xf32, #tpu.memory_space<vmem>>, %arg1: memref<288x128xf32, #tpu.memory_space<vmem>>, %arg2: memref<8x128xf32, #tpu.memory_space<vmem>>, %arg3: memref<8x2xf32, #tpu.memory_space<vmem>>) attributes {dimension_semantics = [], scalar_prefetch = 0 : i64, scratch_operands = 0 : i64, tpu.core_type = #tpu.core_type<tc>} {
    %c0 = arith.constant 0 : index
    %c0_0 = arith.constant 0 : index
    %0 = vector.load %arg2[%c0, %c0_0] : memref<8x128xf32, #tpu.memory_space<vmem>>, vector<8x128xf32>
    %1 = vector.extract_strided_slice %0 {offsets = [0, 0], sizes = [1, 128], strides = [1, 1]} : vector<8x128xf32> to vector<1x128xf32>
    %2 = vector.extract_strided_slice %0 {offsets = [1, 0], sizes = [1, 128], strides = [1, 1]} : vector<8x128xf32> to vector<1x128xf32>
    %3 = vector.extract_strided_slice %0 {offsets = [2, 0], sizes = [1, 128], strides = [1, 1]} : vector<8x128xf32> to vector<1x128xf32>
    %4 = vector.extract_strided_slice %0 {offsets = [3, 0], sizes = [1, 128], strides = [1, 1]} : vector<8x128xf32> to vector<1x128xf32>
    %5 = vector.extract_strided_slice %0 {offsets = [4, 0], sizes = [1, 2], strides = [1, 1]} : vector<8x128xf32> to vector<1x2xf32>
    %6 = vector.extract_strided_slice %0 {offsets = [5, 0], sizes = [1, 2], strides = [1, 1]} : vector<8x128xf32> to vector<1x2xf32>
    %c0_1 = arith.constant 0 : index
    %c0_2 = arith.constant 0 : index
    %7 = vector.load %arg0[%c0_1, %c0_2] : memref<8x22xf32, #tpu.memory_space<vmem>>, vector<8x22xf32>
    %c0_3 = arith.constant 0 : index
    %c0_4 = arith.constant 0 : index
    %8 = vector.load %arg1[%c0_3, %c0_4] : memref<288x128xf32, #tpu.memory_space<vmem>>, vector<22x128xf32>
    %cst = arith.constant dense<0.000000e+00> : vector<8x128xf32>
    %9 = tpu.matmul %7, %8, %cst {dimension_numbers = #tpu.dot_dimension_numbers<[1], [0], [0], [1], [0, 0, 1, 1], [], []>} : vector<8x22xf32>, vector<22x128xf32>, vector<8x128xf32> -> vector<8x128xf32>
    %10 = vector.broadcast %1 : vector<1x128xf32> to vector<8x128xf32>
    %11 = arith.addf %9, %10 : vector<8x128xf32>
    %cst_5 = arith.constant dense<0.000000e+00> : vector<128xf32>
    %12 = vector.multi_reduction <add>, %11, %cst_5 [0] : vector<8x128xf32> to vector<128xf32>
    %13 = vector.shape_cast %12 : vector<128xf32> to vector<1x128xf32>
    %14 = arith.mulf %11, %11 : vector<8x128xf32>
    %cst_6 = arith.constant dense<0.000000e+00> : vector<128xf32>
    %15 = vector.multi_reduction <add>, %14, %cst_6 [0] : vector<8x128xf32> to vector<128xf32>
    %16 = vector.shape_cast %15 : vector<128xf32> to vector<1x128xf32>
    %cst_7 = arith.constant 1.250000e-01 : f32
    %17 = vector.broadcast %cst_7 : f32 to vector<1x128xf32>
    %18 = arith.mulf %13, %17 : vector<1x128xf32>
    %cst_8 = arith.constant 1.250000e-01 : f32
    %19 = vector.broadcast %cst_8 : f32 to vector<1x128xf32>
    %20 = arith.mulf %16, %19 : vector<1x128xf32>
    %21 = arith.mulf %18, %18 : vector<1x128xf32>
    %22 = arith.subf %20, %21 : vector<1x128xf32>
    %cst_9 = arith.constant 0.000000e+00 : f32
    %23 = vector.broadcast %cst_9 : f32 to vector<1x128xf32>
    %24 = arith.maximumf %22, %23 : vector<1x128xf32>
    %25 = vector.broadcast %18 : vector<1x128xf32> to vector<8x128xf32>
    %26 = arith.subf %11, %25 : vector<8x128xf32>
    %cst_10 = arith.constant 9.99999974E-6 : f32
    %27 = vector.broadcast %cst_10 : f32 to vector<1x128xf32>
    %28 = arith.addf %24, %27 : vector<1x128xf32>
    %29 = math.rsqrt %28 : vector<1x128xf32>
    %30 = vector.broadcast %29 : vector<1x128xf32> to vector<8x128xf32>
    %31 = arith.mulf %26, %30 : vector<8x128xf32>
    %cst_11 = arith.constant 0.000000e+00 : f32
    %32 = vector.broadcast %cst_11 : f32 to vector<8x128xf32>
    %33 = arith.maximumf %31, %32 : vector<8x128xf32>
    %c32 = arith.constant 32 : index
    %c0_12 = arith.constant 0 : index
    %34 = vector.load %arg1[%c32, %c0_12] : memref<288x128xf32, #tpu.memory_space<vmem>>, vector<128x128xf32>
    %cst_13 = arith.constant dense<0.000000e+00> : vector<8x128xf32>
    %35 = tpu.matmul %33, %34, %cst_13 {dimension_numbers = #tpu.dot_dimension_numbers<[1], [0], [0], [1], [0, 0, 1, 1], [], []>} : vector<8x128xf32>, vector<128x128xf32>, vector<8x128xf32> -> vector<8x128xf32>
    %36 = vector.broadcast %2 : vector<1x128xf32> to vector<8x128xf32>
    %37 = arith.addf %35, %36 : vector<8x128xf32>
    %cst_14 = arith.constant dense<0.000000e+00> : vector<128xf32>
    %38 = vector.multi_reduction <add>, %37, %cst_14 [0] : vector<8x128xf32> to vector<128xf32>
    %39 = vector.shape_cast %38 : vector<128xf32> to vector<1x128xf32>
    %40 = arith.mulf %37, %37 : vector<8x128xf32>
    %cst_15 = arith.constant dense<0.000000e+00> : vector<128xf32>
    %41 = vector.multi_reduction <add>, %40, %cst_15 [0] : vector<8x128xf32> to vector<128xf32>
    %42 = vector.shape_cast %41 : vector<128xf32> to vector<1x128xf32>
    %cst_16 = arith.constant 1.250000e-01 : f32
    %43 = vector.broadcast %cst_16 : f32 to vector<1x128xf32>
    %44 = arith.mulf %39, %43 : vector<1x128xf32>
    %cst_17 = arith.constant 1.250000e-01 : f32
    %45 = vector.broadcast %cst_17 : f32 to vector<1x128xf32>
    %46 = arith.mulf %42, %45 : vector<1x128xf32>
    %47 = arith.mulf %44, %44 : vector<1x128xf32>
    %48 = arith.subf %46, %47 : vector<1x128xf32>
    %cst_18 = arith.constant 0.000000e+00 : f32
    %49 = vector.broadcast %cst_18 : f32 to vector<1x128xf32>
    %50 = arith.maximumf %48, %49 : vector<1x128xf32>
    %51 = vector.broadcast %44 : vector<1x128xf32> to vector<8x128xf32>
    %52 = arith.subf %37, %51 : vector<8x128xf32>
    %cst_19 = arith.constant 9.99999974E-6 : f32
    %53 = vector.broadcast %cst_19 : f32 to vector<1x128xf32>
    %54 = arith.addf %50, %53 : vector<1x128xf32>
    %55 = math.rsqrt %54 : vector<1x128xf32>
    %56 = vector.broadcast %55 : vector<1x128xf32> to vector<8x128xf32>
    %57 = arith.mulf %52, %56 : vector<8x128xf32>
    %cst_20 = arith.constant 0.000000e+00 : f32
    %58 = vector.broadcast %cst_20 : f32 to vector<8x128xf32>
    %59 = arith.maximumf %57, %58 : vector<8x128xf32>
    %c160 = arith.constant 160 : index
    %c0_21 = arith.constant 0 : index
    %60 = vector.load %arg1[%c160, %c0_21] : memref<288x128xf32, #tpu.memory_space<vmem>>, vector<128x128xf32>
    %cst_22 = arith.constant dense<0.000000e+00> : vector<8x128xf32>
    %61 = tpu.matmul %59, %60, %cst_22 {dimension_numbers = #tpu.dot_dimension_numbers<[1], [0], [0], [1], [0, 0, 1, 1], [], []>} : vector<8x128xf32>, vector<128x128xf32>, vector<8x128xf32> -> vector<8x128xf32>
    %62 = vector.broadcast %3 : vector<1x128xf32> to vector<8x128xf32>
    %63 = arith.addf %61, %62 : vector<8x128xf32>
    %cst_23 = arith.constant dense<0.000000e+00> : vector<128xf32>
    %64 = vector.multi_reduction <add>, %63, %cst_23 [0] : vector<8x128xf32> to vector<128xf32>
    %65 = vector.shape_cast %64 : vector<128xf32> to vector<1x128xf32>
    %66 = arith.mulf %63, %63 : vector<8x128xf32>
    %cst_24 = arith.constant dense<0.000000e+00> : vector<128xf32>
    %67 = vector.multi_reduction <add>, %66, %cst_24 [0] : vector<8x128xf32> to vector<128xf32>
    %68 = vector.shape_cast %67 : vector<128xf32> to vector<1x128xf32>
    %cst_25 = arith.constant 1.250000e-01 : f32
    %69 = vector.broadcast %cst_25 : f32 to vector<1x128xf32>
    %70 = arith.mulf %65, %69 : vector<1x128xf32>
    %cst_26 = arith.constant 1.250000e-01 : f32
    %71 = vector.broadcast %cst_26 : f32 to vector<1x128xf32>
    %72 = arith.mulf %68, %71 : vector<1x128xf32>
    %73 = arith.mulf %70, %70 : vector<1x128xf32>
    %74 = arith.subf %72, %73 : vector<1x128xf32>
    %cst_27 = arith.constant 0.000000e+00 : f32
    %75 = vector.broadcast %cst_27 : f32 to vector<1x128xf32>
    %76 = arith.maximumf %74, %75 : vector<1x128xf32>
    %77 = vector.broadcast %70 : vector<1x128xf32> to vector<8x128xf32>
    %78 = arith.subf %63, %77 : vector<8x128xf32>
    %cst_28 = arith.constant 9.99999974E-6 : f32
    %79 = vector.broadcast %cst_28 : f32 to vector<1x128xf32>
    %80 = arith.addf %76, %79 : vector<1x128xf32>
    %81 = math.rsqrt %80 : vector<1x128xf32>
    %82 = vector.broadcast %81 : vector<1x128xf32> to vector<8x128xf32>
    %83 = arith.mulf %78, %82 : vector<8x128xf32>
    %cst_29 = arith.constant 0.000000e+00 : f32
    %84 = vector.broadcast %cst_29 : f32 to vector<8x128xf32>
    %85 = arith.maximumf %83, %84 : vector<8x128xf32>
    %86 = vector.broadcast %4 : vector<1x128xf32> to vector<8x128xf32>
    %87 = arith.mulf %85, %86 : vector<8x128xf32>
    %cst_30 = arith.constant dense<0.000000e+00> : vector<8xf32>
    %88 = vector.multi_reduction <add>, %87, %cst_30 [1] : vector<8x128xf32> to vector<8xf32>
    %89 = vector.shape_cast %88 : vector<8xf32> to vector<8x1xf32>
    %90 = vector.broadcast %89 : vector<8x1xf32> to vector<8x2xf32>
    %91 = vector.broadcast %6 : vector<1x2xf32> to vector<8x2xf32>
    %92 = arith.mulf %90, %91 : vector<8x2xf32>
    %93 = vector.broadcast %5 : vector<1x2xf32> to vector<8x2xf32>
    %94 = arith.addf %92, %93 : vector<8x2xf32>
    %cst_31 = arith.constant 0.000000e+00 : f32
    %95 = vector.broadcast %cst_31 : f32 to vector<8x2xf32>
    %96 = arith.subf %95, %94 : vector<8x2xf32>
    %97 = math.exp %96 : vector<8x2xf32>
    %cst_32 = arith.constant 1.000000e+00 : f32
    %98 = vector.broadcast %cst_32 : f32 to vector<8x2xf32>
    %99 = arith.addf %98, %97 : vector<8x2xf32>
    %cst_33 = arith.constant 1.000000e+00 : f32
    %100 = vector.broadcast %cst_33 : f32 to vector<8x2xf32>
    %101 = arith.divf %100, %99 : vector<8x2xf32>
    %c0_34 = arith.constant 0 : index
    %c0_35 = arith.constant 0 : index
    %102 = vector.load %arg3[%c0_34, %c0_35] : memref<8x2xf32, #tpu.memory_space<vmem>>, vector<8x2xf32>
    tpu.vector_store %arg3[%c0_34, %c0_35], %101 {strides = array<i32>} : memref<8x2xf32, #tpu.memory_space<vmem>>, vector<8x2xf32>,
    return
  }
}

</mosaic_0001>

<llo_original>
// kernel: base_net_mushroom_forward.1
$region0: #{base_net_mushroom_forward.1}
  #allocation0 [shape = 'u32[]', space=smem, size = 0x4, offset = 0x4, fixed_abs, tag = 'smem constant byte address 0x4 - core index']
  #allocation1 [shape = 'u32[144,128]{1,0:T(1,128)}', space=vmem, size = 0x12000, scoped, tag = 'internal scratch']
  %s0 = inlined_call_operand.hbm [shape: f32[8,22], index: 0, kind: input, shape index: {}]
  %s1 = inlined_call_operand.hbm [shape: f32[288,128], index: 1, kind: input, shape index: {}]
  %s2 = inlined_call_operand.hbm [shape: f32[8,128], index: 2, kind: input, shape index: {}]
  %s3 = inlined_call_operand.vmem [shape: f32[8,2], index: 3, kind: output, shape index: {}]
  %s4 = sld [smem:[#allocation0]]
  $region34: #{base_net_mushroom_forward.1} parent=0
    _
  %s6 = ssub.s32 1, %s4
  %s7 = scalar_select 0, %s6, %s4
  $region1: #{base_net_mushroom_forward.1} parent=0
    #allocation2 [shape = 'u8[4096]{0}', space=vmem, size = 0x1000, scoped, tag = 'input window, operand 0, single buffered']
    #allocation3 [shape = 's32[1]{0}', space=sflag, size = 0x4, scoped, tag = 'scoped memory for base_net_mushroom_forward.1']
    #allocation4 [shape = 'u8[147456]{0}', space=vmem, size = 0x24000, scoped, tag = 'input window, operand 1, single buffered']
    #allocation5 [shape = 's32[1]{0}', space=sflag, size = 0x4, scoped, tag = 'scoped memory for base_net_mushroom_forward.1']
    #allocation6 [shape = 'u8[4096]{0}', space=vmem, size = 0x1000, scoped, tag = 'input window, operand 2, single buffered']
    %8 = vsyncpa [#allocation3], 0
    %9 = vsyncpa [#allocation5], 0
    // Predicated region
    $region2: #{base_net_mushroom_forward.1} parent=1 // pred_check
      _
    $region3: #{base_net_mushroom_forward.1} parent=1 // pred_check_branch
      %11 = sbr.rel (0) target = $region5
    $region4: #{base_net_mushroom_forward.1} parent=1 // pred_region
      %s13 = ssub.s32 128, 128
      %14 = vsyncadd [#allocation3], %s13
      %s16 = sshll.u32 [#allocation2], 4
      %s17 = int_to_ptr.vmem [resolvable:$true] %s16
      %19 = dma.hbm_to_vmem [thread:$0]  %s0, 128, %s17, [#allocation3]
    $region5: #{base_net_mushroom_forward.1} parent=1 // pred_fallthru
      _
    // Predicated region
    $region6: #{base_net_mushroom_forward.1} parent=1 // pred_check
      _
    $region7: #{base_net_mushroom_forward.1} parent=1 // pred_check_branch
      %21 = sbr.rel (0) target = $region9
    $region8: #{base_net_mushroom_forward.1} parent=1 // pred_region
      %s23 = ssub.s32 4608, 4608
      %24 = vsyncadd [#allocation5], %s23
      %s25 = sshll.u32 [#allocation4], 4
      %s26 = int_to_ptr.vmem [resolvable:$true] %s25
      %31 = dma.hbm_to_vmem [thread:$0]  %s1, 4608, %s26, [#allocation5], 128, 128, 8
    $region9: #{base_net_mushroom_forward.1} parent=1 // pred_fallthru
      _
    // Predicated region
    $region10: #{base_net_mushroom_forward.1} parent=1 // pred_check
      _
    $region11: #{base_net_mushroom_forward.1} parent=1 // pred_check_branch
      %33 = sbr.rel (0) target = $region13
    $region12: #{base_net_mushroom_forward.1} parent=1 // pred_region
      %s35 = ssub.s32 128, 128
      %36 = vsyncadd [#allocation5], %s35
      %s38 = sshll.u32 [#allocation6], 4
      %s39 = int_to_ptr.vmem [resolvable:$true] %s38
      %41 = dma.hbm_to_vmem [thread:$0]  %s2, 128, %s39, [#allocation5]
    $region13: #{base_net_mushroom_forward.1} parent=1 // pred_fallthru
      _
    // Predicated region
    $region14: #{base_net_mushroom_forward.1} parent=1 // pred_check
      _
    $region15: #{base_net_mushroom_forward.1} parent=1 // pred_check_branch
      %43 = sbr.rel (0) target = $region17
    $region16: #{base_net_mushroom_forward.1} parent=1 // pred_region
      %44 = dma.done [#allocation3], 128
    $region17: #{base_net_mushroom_forward.1} parent=1 // pred_fallthru
      _
    // Predicated region
    $region18: #{base_net_mushroom_forward.1} parent=1 // pred_check
      _
    $region19: #{base_net_mushroom_forward.1} parent=1 // pred_check_branch
      %46 = sbr.rel (0) target = $region21
    $region20: #{base_net_mushroom_forward.1} parent=1 // pred_region
      %47 = dma.done [#allocation5], 4608
    $region21: #{base_net_mushroom_forward.1} parent=1 // pred_fallthru
      _
    // Predicated region
    $region22: #{base_net_mushroom_forward.1} parent=1 // pred_check
      _
    $region23: #{base_net_mushroom_forward.1} parent=1 // pred_check_branch
      %49 = sbr.rel (0) target = $region25
    $region24: #{base_net_mushroom_forward.1} parent=1 // pred_region
      %50 = dma.done [#allocation5], 128
    $region25: #{base_net_mushroom_forward.1} parent=1 // pred_fallthru
      _
    %v51 = vld [vmem:[#allocation6] sm:$0xff]
    %v52 = vld [vmem:[#allocation2] sm:$0xff]
    %v53 = vld [vmem:[#allocation4] sm:$0xff]
    %v54 = vld [vmem:[#allocation4 + $0x8] sm:$0xff]
    %v55 = vld [vmem:[#allocation4 + $0x10] sm:$0x3f]
    %v56 = vlaneseq
    %v57 = vshrl.u32 %v56, 7
    %v58 = vsub.s32 0, %v57
    %v59 = vrot.slane %v51, %v58
    %vm60 = vcmask 179200
    %v62 = vsel %vm60, %v52, 0
    %vm64 = vcmask 1045504
    %v66 = vsel %vm64, %v55, 0
    %68 = vmatprep.subr.mxu0 0.0
    %69 = vmatpush1.msra.mxu0 %v53
    %70 = vmatprep.subr.mxu0 0.0
    %71 = vmatpush1.msra.mxu0 %v54
    %72 = vmatprep.subr.mxu0 0.0
    %73 = vmatpush1.msra.mxu0 %v66
    %74 = vmatprep.subr.mxu0 0.0
    %75 = vmatpush1.msra.mxu0 0.0
    %76 = vmatprep.subr.mxu0 0.0
    %77 = vmatpush1.msra.mxu0 0.0
    %78 = vmatprep.subr.mxu0 0.0
    %79 = vmatpush1.msra.mxu0 0.0
    %80 = vmatprep.subr.mxu0 0.0
    %81 = vmatpush1.msra.mxu0 0.0
    %82 = vmatprep.subr.mxu0 0.0
    %83 = vmatpush1.msra.mxu0 0.0
    %84 = vmatprep.subr.mxu0 0.0
    %85 = vmatpush1.msra.mxu0 0.0
    %86 = vmatprep.subr.mxu0 0.0
    %87 = vmatpush1.msra.mxu0 0.0
    %88 = vmatprep.subr.mxu0 0.0
    %89 = vmatpush1.msra.mxu0 0.0
    %90 = vmatprep.subr.mxu0 0.0
    %91 = vmatpush1.msra.mxu0 0.0
    %92 = vmatprep.subr.mxu0 0.0
    %93 = vmatpush1.msra.mxu0 0.0
    %94 = vmatprep.subr.mxu0 0.0
    %95 = vmatpush1.msra.mxu0 0.0
    %96 = vmatprep.subr.mxu0 0.0
    %97 = vmatpush1.msra.mxu0 0.0
    %98 = vmatprep.subr.mxu0 0.0
    %99 = vmatpush1.msra.mxu0 0.0
    %100 = vmatprep.subr.mxu0 0.0
    %101 = vmatpush1.msra.mxu0 0.0
    %102 = vmatprep.subr.mxu0 0.0
    %103 = vmatpush1.msra.mxu0 0.0
    %104 = vmatprep.subr.mxu0 0.0
    %105 = vmatpush1.msra.mxu0 0.0
    %106 = vmatprep.subr.mxu0 0.0
    %107 = vmatpush1.msra.mxu0 0.0
    %108 = vmatprep.subr.mxu0 0.0
    %109 = vmatpush1.msra.mxu0 0.0
    %110 = vmatprep.subr.mxu0 0.0
    %111 = vmatpush1.msra.mxu0 0.0
    %112 = vmatprep.subr.mxu0 0.0
    %113 = vmatpush1.msra.mxu0 0.0
    %114 = vmatprep.subr.mxu0 0.0
    %115 = vmatpush1.msra.mxu0 0.0
    %116 = vmatprep.subr.mxu0 0.0
    %117 = vmatpush1.msra.mxu0 0.0
    %118 = vmatprep.subr.mxu0 0.0
    %119 = vmatpush1.msra.mxu0 0.0
    %120 = vmatprep.subr.mxu0 0.0
    %121 = vmatpush1.msra.mxu0 0.0
    %122 = vmatprep.subr.mxu0 0.0
    %123 = vmatpush1.msra.mxu0 0.0
    %124 = vmatprep.subr.mxu0 0.0
    %125 = vmatpush1.msra.mxu0 0.0
    %126 = vmatprep.subr.mxu0 0.0
    %127 = vmatpush1.msra.mxu0 0.0
    %128 = vmatprep.subr.mxu0 0.0
    %129 = vmatpush1.msra.mxu0 0.0
    %130 = vmatprep.subr.mxu0 0.0
    %131 = vmatpush1.msra.mxu0 0.0
    %132 = vmatprep.mubr.f32.mxu0 0.0
    %133 = vmatmul.mubr.f32.gmra.mrb[0].mxu0 %v62
    %v134 = vpop.f32.mrb[0].mxu0
    %v135 = vadd.f32 %v59, %v134
    %v136 = vpop.f32.mrb[0].mxu0
    %137 = vdwg.mxu0
    %v138 = vrot.slane %v135, 4
    %v139 = vadd.f32 %v135, %v138
    %v140 = vrot.slane %v139, 2
    %v141 = vadd.f32 %v139, %v140
    %v142 = vrot.slane %v141, 1
    %v143 = vadd.f32 %v141, %v142
    %v144 = vmul.f32 %v135, %v135
    %v145 = vrot.slane %v144, 4
    %v146 = vadd.f32 %v144, %v145
    %v147 = vrot.slane %v146, 2
    %v148 = vadd.f32 %v146, %v147
    %v149 = vrot.slane %v148, 1
    %v150 = vadd.f32 %v148, %v149
    %v151 = vmul.f32 %v143, 0.125
    %v152 = vmul.f32 %v150, 0.125
    %v153 = vmul.f32 %v151, %v151
    %v154 = vsub.f32 %v152, %v153
    %v155 = vmax.f32 %v154, 0.0
    %v156 = vsub.f32 %v135, %v151
    %v157 = vadd.f32 %v155, 1e-05
    %v158 = vrsqrt.pop %v157
    %v159 = vmul.f32 %v156, %v158
    %v160 = vmax.f32 %v159, 0.0
    %v161 = vld [vmem:[#allocation4 + $0x20] sm:$0xff]
    %v162 = vld [vmem:[#allocation4 + $0x28] sm:$0xff]
    %v163 = vld [vmem:[#allocation4 + $0x30] sm:$0xff]
    %v164 = vld [vmem:[#allocation4 + $0x38] sm:$0xff]
    %v165 = vld [vmem:[#allocation4 + $0x40] sm:$0xff]
    %v166 = vld [vmem:[#allocation4 + $0x48] sm:$0xff]
    %v167 = vld [vmem:[#allocation4 + $0x50] sm:$0xff]
    %v168 = vld [vmem:[#allocation4 + $0x58] sm:$0xff]
    %v169 = vld [vmem:[#allocation4 + $0x60] sm:$0xff]
    %v170 = vld [vmem:[#allocation4 + $0x68] sm:$0xff]
    %v171 = vld [vmem:[#allocation4 + $0x70] sm:$0xff]
    %v172 = vld [vmem:[#allocation4 + $0x78] sm:$0xff]
    %v173 = vld [vmem:[#allocation4 + $0x80] sm:$0xff]
    %v174 = vld [vmem:[#allocation4 + $0x88] sm:$0xff]
    %v175 = vld [vmem:[#allocation4 + $0x90] sm:$0xff]
    %v176 = vld [vmem:[#allocation4 + $0x98] sm:$0xff]
    %v177 = vlaneseq
    %v178 = vshrl.u32 %v177, 7
    %v179 = vsub.s32 1, %v178
    %v180 = vrot.slane %v51, %v179
    %181 = vmatprep.subr.mxu0 0.0
    %182 = vmatpush1.msra.mxu0 %v161
    %183 = vmatprep.subr.mxu0 0.0
    %184 = vmatpush1.msra.mxu0 %v162
    %185 = vmatprep.subr.mxu0 0.0
    %186 = vmatpush1.msra.mxu0 %v163
    %187 = vmatprep.subr.mxu0 0.0
    %188 = vmatpush1.msra.mxu0 %v164
    %189 = vmatprep.subr.mxu0 0.0
    %190 = vmatpush1.msra.mxu0 %v165
    %191 = vmatprep.subr.mxu0 0.0
    %192 = vmatpush1.msra.mxu0 %v166
    %193 = vmatprep.subr.mxu0 0.0
    %194 = vmatpush1.msra.mxu0 %v167
    %195 = vmatprep.subr.mxu0 0.0
    %196 = vmatpush1.msra.mxu0 %v168
    %197 = vmatprep.subr.mxu0 0.0
    %198 = vmatpush1.msra.mxu0 %v169
    %199 = vmatprep.subr.mxu0 0.0
    %200 = vmatpush1.msra.mxu0 %v170
    %201 = vmatprep.subr.mxu0 0.0
    %202 = vmatpush1.msra.mxu0 %v171
    %203 = vmatprep.subr.mxu0 0.0
    %204 = vmatpush1.msra.mxu0 %v172
    %205 = vmatprep.subr.mxu0 0.0
    %206 = vmatpush1.msra.mxu0 %v173
    %207 = vmatprep.subr.mxu0 0.0
    %208 = vmatpush1.msra.mxu0 %v174
    %209 = vmatprep.subr.mxu0 0.0
    %210 = vmatpush1.msra.mxu0 %v175
    %211 = vmatprep.subr.mxu0 0.0
    %212 = vmatpush1.msra.mxu0 %v176
    %213 = vmatprep.subr.mxu0 0.0
    %214 = vmatpush1.msra.mxu0 0.0
    %215 = vmatprep.subr.mxu0 0.0
    %216 = vmatpush1.msra.mxu0 0.0
    %217 = vmatprep.subr.mxu0 0.0
    %218 = vmatpush1.msra.mxu0 0.0
    %219 = vmatprep.subr.mxu0 0.0
    %220 = vmatpush1.msra.mxu0 0.0
    %221 = vmatprep.subr.mxu0 0.0
    %222 = vmatpush1.msra.mxu0 0.0
    %223 = vmatprep.subr.mxu0 0.0
    %224 = vmatpush1.msra.mxu0 0.0
    %225 = vmatprep.subr.mxu0 0.0
    %226 = vmatpush1.msra.mxu0 0.0
    %227 = vmatprep.subr.mxu0 0.0
    %228 = vmatpush1.msra.mxu0 0.0
    %229 = vmatprep.subr.mxu0 0.0
    %230 = vmatpush1.msra.mxu0 0.0
    %231 = vmatprep.subr.mxu0 0.0
    %232 = vmatpush1.msra.mxu0 0.0
    %233 = vmatprep.subr.mxu0 0.0
    %234 = vmatpush1.msra.mxu0 0.0
    %235 = vmatprep.subr.mxu0 0.0
    %236 = vmatpush1.msra.mxu0 0.0
    %237 = vmatprep.subr.mxu0 0.0
    %238 = vmatpush1.msra.mxu0 0.0
    %239 = vmatprep.subr.mxu0 0.0
    %240 = vmatpush1.msra.mxu0 0.0
    %241 = vmatprep.subr.mxu0 0.0
    %242 = vmatpush1.msra.mxu0 0.0
    %243 = vmatprep.subr.mxu0 0.0
    %244 = vmatpush1.msra.mxu0 0.0
    %245 = vmatprep.mubr.f32.mxu0 0.0
    %246 = vmatmul.mubr.f32.gmra.mrb[0].mxu0 %v160
    %v247 = vpop.f32.mrb[0].mxu0
    %v248 = vadd.f32 %v180, %v247
    %v249 = vpop.f32.mrb[0].mxu0
    %250 = vdwg.mxu0
    %v251 = vrot.slane %v248, 4
    %v252 = vadd.f32 %v248, %v251
    %v253 = vrot.slane %v252, 2
    %v254 = vadd.f32 %v252, %v253
    %v255 = vrot.slane %v254, 1
    %v256 = vadd.f32 %v254, %v255
    %v257 = vmul.f32 %v248, %v248
    %v258 = vrot.slane %v257, 4
    %v259 = vadd.f32 %v257, %v258
    %v260 = vrot.slane %v259, 2
    %v261 = vadd.f32 %v259, %v260
    %v262 = vrot.slane %v261, 1
    %v263 = vadd.f32 %v261, %v262
    %v264 = vmul.f32 %v256, 0.125
    %v265 = vmul.f32 %v263, 0.125
    %v266 = vmul.f32 %v264, %v264
    %v267 = vsub.f32 %v265, %v266
    %v268 = vmax.f32 %v267, 0.0
    %v269 = vsub.f32 %v248, %v264
    %v270 = vadd.f32 %v268, 1e-05
    %v271 = vrsqrt.pop %v270
    %v272 = vmul.f32 %v269, %v271
    %v273 = vmax.f32 %v272, 0.0
    %v274 = vld [vmem:[#allocation4 + $0xa0] sm:$0xff]
    %v275 = vld [vmem:[#allocation4 + $0xa8] sm:$0xff]
    %v276 = vld [vmem:[#allocation4 + $0xb0] sm:$0xff]
    %v277 = vld [vmem:[#allocation4 + $0xb8] sm:$0xff]
    %v278 = vld [vmem:[#allocation4 + $0xc0] sm:$0xff]
    %v279 = vld [vmem:[#allocation4 + $0xc8] sm:$0xff]
    %v280 = vld [vmem:[#allocation4 + $0xd0] sm:$0xff]
    %v281 = vld [vmem:[#allocation4 + $0xd8] sm:$0xff]
    %v282 = vld [vmem:[#allocation4 + $0xe0] sm:$0xff]
    %v283 = vld [vmem:[#allocation4 + $0xe8] sm:$0xff]
    %v284 = vld [vmem:[#allocation4 + $0xf0] sm:$0xff]
    %v285 = vld [vmem:[#allocation4 + $0xf8] sm:$0xff]
    %v286 = vld [vmem:[#allocation4 + $0x100] sm:$0xff]
    %v287 = vld [vmem:[#allocation4 + $0x108] sm:$0xff]
    %v288 = vld [vmem:[#allocation4 + $0x110] sm:$0xff]
    %v289 = vld [vmem:[#allocation4 + $0x118] sm:$0xff]
    %v290 = vlaneseq
    %v291 = vshrl.u32 %v290, 7
    %v292 = vsub.s32 2, %v291
    %v293 = vrot.slane %v51, %v292
    %294 = vmatprep.subr.mxu0 0.0
    %295 = vmatpush1.msra.mxu0 %v274
    %296 = vmatprep.subr.mxu0 0.0
    %297 = vmatpush1.msra.mxu0 %v275
    %298 = vmatprep.subr.mxu0 0.0
    %299 = vmatpush1.msra.mxu0 %v276
    %300 = vmatprep.subr.mxu0 0.0
    %301 = vmatpush1.msra.mxu0 %v277
    %302 = vmatprep.subr.mxu0 0.0
    %303 = vmatpush1.msra.mxu0 %v278
    %304 = vmatprep.subr.mxu0 0.0
    %305 = vmatpush1.msra.mxu0 %v279
    %306 = vmatprep.subr.mxu0 0.0
    %307 = vmatpush1.msra.mxu0 %v280
    %308 = vmatprep.subr.mxu0 0.0
    %309 = vmatpush1.msra.mxu0 %v281
    %310 = vmatprep.subr.mxu0 0.0
    %311 = vmatpush1.msra.mxu0 %v282
    %312 = vmatprep.subr.mxu0 0.0
    %313 = vmatpush1.msra.mxu0 %v283
    %314 = vmatprep.subr.mxu0 0.0
    %315 = vmatpush1.msra.mxu0 %v284
    %316 = vmatprep.subr.mxu0 0.0
    %317 = vmatpush1.msra.mxu0 %v285
    %318 = vmatprep.subr.mxu0 0.0
    %319 = vmatpush1.msra.mxu0 %v286
    %320 = vmatprep.subr.mxu0 0.0
    %321 = vmatpush1.msra.mxu0 %v287
    %322 = vmatprep.subr.mxu0 0.0
    %323 = vmatpush1.msra.mxu0 %v288
    %324 = vmatprep.subr.mxu0 0.0
    %325 = vmatpush1.msra.mxu0 %v289
    %326 = vmatprep.subr.mxu0 0.0
    %327 = vmatpush1.msra.mxu0 0.0
    %328 = vmatprep.subr.mxu0 0.0
    %329 = vmatpush1.msra.mxu0 0.0
    %330 = vmatprep.subr.mxu0 0.0
    %331 = vmatpush1.msra.mxu0 0.0
    %332 = vmatprep.subr.mxu0 0.0
    %333 = vmatpush1.msra.mxu0 0.0
    %334 = vmatprep.subr.mxu0 0.0
    %335 = vmatpush1.msra.mxu0 0.0
    %336 = vmatprep.subr.mxu0 0.0
    %337 = vmatpush1.msra.mxu0 0.0
    %338 = vmatprep.subr.mxu0 0.0
    %339 = vmatpush1.msra.mxu0 0.0
    %340 = vmatprep.subr.mxu0 0.0
    %341 = vmatpush1.msra.mxu0 0.0
    %342 = vmatprep.subr.mxu0 0.0
    %343 = vmatpush1.msra.mxu0 0.0
    %344 = vmatprep.subr.mxu0 0.0
    %345 = vmatpush1.msra.mxu0 0.0
    %346 = vmatprep.subr.mxu0 0.0
    %347 = vmatpush1.msra.mxu0 0.0
    %348 = vmatprep.subr.mxu0 0.0
    %349 = vmatpush1.msra.mxu0 0.0
    %350 = vmatprep.subr.mxu0 0.0
    %351 = vmatpush1.msra.mxu0 0.0
    %352 = vmatprep.subr.mxu0 0.0
    %353 = vmatpush1.msra.mxu0 0.0
    %354 = vmatprep.subr.mxu0 0.0
    %355 = vmatpush1.msra.mxu0 0.0
    %356 = vmatprep.subr.mxu0 0.0
    %357 = vmatpush1.msra.mxu0 0.0
    %358 = vmatprep.mubr.f32.mxu0 0.0
    %359 = vmatmul.mubr.f32.gmra.mrb[0].mxu0 %v273
    %v360 = vpop.f32.mrb[0].mxu0
    %v361 = vadd.f32 %v293, %v360
    %v362 = vpop.f32.mrb[0].mxu0
    %363 = vdwg.mxu0
    %v364 = vrot.slane %v361, 4
    %v365 = vadd.f32 %v361, %v364
    %v366 = vrot.slane %v365, 2
    %v367 = vadd.f32 %v365, %v366
    %v368 = vrot.slane %v367, 1
    %v369 = vadd.f32 %v367, %v368
    %v370 = vmul.f32 %v361, %v361
    %v371 = vrot.slane %v370, 4
    %v372 = vadd.f32 %v370, %v371
    %v373 = vrot.slane %v372, 2
    %v374 = vadd.f32 %v372, %v373
    %v375 = vrot.slane %v374, 1
    %v376 = vadd.f32 %v374, %v375
    %v377 = vmul.f32 %v369, 0.125
    %v378 = vmul.f32 %v376, 0.125
    %v379 = vmul.f32 %v377, %v377
    %v380 = vsub.f32 %v378, %v379
    %v381 = vmax.f32 %v380, 0.0
    %v382 = vsub.f32 %v361, %v377
    %v383 = vadd.f32 %v381, 1e-05
    %v384 = vrsqrt.pop %v383
    %v385 = vmul.f32 %v382, %v384
    %v386 = vmax.f32 %v385, 0.0
    %v387 = vlaneseq
    %v388 = vshrl.u32 %v387, 7
    %v389 = vsub.s32 3, %v388
    %v390 = vrot.slane %v51, %v389
    %v391 = vmul.f32 %v386, %v390
    %392 = vadd.xlane.f32.xlu0 %v391
    %v393 = vpop.xlane.xlu0 %392
    %v394 = vlaneseq
    %v395 = vshrl.u32 %v394, 7
    %v396 = vsub.s32 5, %v395
    %v397 = vrot.slane %v51, %v396
    %v398 = vmul.f32 %v393, %v397
    %v399 = vlaneseq
    %v400 = vshrl.u32 %v399, 7
    %v401 = vsub.s32 4, %v400
    %v402 = vrot.slane %v51, %v401
    %v403 = vadd.f32 %v398, %v402
    %v404 = vsub.f32 0.0, %v403
    %v405 = vmul.f32 %v404, 1.442695
    %v406 = vpow.pop %v405
    %v407 = vadd.f32 %v406, 1.0
    %v408 = vrcp.pop %v407
    %v409 = vmul.f32 1.0, %v408
    %vm410 = vcmask 15360
    %411 = vst.msk [vmem:[%s3] sm:$0xff] %vm410, %v409
    // Predicated region
    $region26: #{base_net_mushroom_forward.1} parent=1 // pred_check
      _
    $region27: #{base_net_mushroom_forward.1} parent=1 // pred_check_branch
      %413 = sbr.rel (0) target = $region29
    $region28: #{base_net_mushroom_forward.1} parent=1 // pred_region
      _
    $region29: #{base_net_mushroom_forward.1} parent=1 // pred_fallthru
      _
    // Predicated region
    $region30: #{base_net_mushroom_forward.1} parent=1 // pred_check
      _
    $region31: #{base_net_mushroom_forward.1} parent=1 // pred_check_branch
      %415 = sbr.rel (0) target = $region33
    $region32: #{base_net_mushroom_forward.1} parent=1 // pred_region
      _
    $region33: #{base_net_mushroom_forward.1} parent=1 // pred_fallthru
      _
    %416 = vsyncpa [#allocation3], 1
    %417 = vsyncpa [#allocation5], 1

</llo_original>
